<compile_context>
chip_gen: v6e
topology: v6e:2x2x1
jax: 0.10.0
libtpu: 0.0.40
codegen_flags: <defaults>
</compile_context>

<pallas_src>
import numpy as np
import jax
import jax.numpy as jnp
from jax.experimental import pallas as pl
from jax.experimental.pallas import tpu as pltpu

EMB_SIZES = (2, 4, 8, 16, 64, 128)
N_LEVELS = len(EMB_SIZES)
D_MAX = max(EMB_SIZES)            # 128
D_CAT = 2 * D_MAX                 # 256 = user features ++ movie features
MAX_NORM = 1.0
BN_EPS = 1e-5

USER_NUM = 32
MOVIE_NUM = 48

LANE = 128
# Input tile (256, TB) f32: TB=2048 -> 2 MiB, 4 MiB double-buffered.
MAX_BATCH_TILE = 2048


def _round_up(x, m):
    return ((x + m - 1) // m) * m


# ----------------------------------------------------------------------------
# Pallas kernel: eval-BN + tanh + Euclidean distance, batch on lanes
# ----------------------------------------------------------------------------
def _rs_mlp_kernel(x_ref, scale_ref, shift_ref, out_ref):
    """
    x_ref     : (256, TB) f32  selected-level pre-folded embeddings;
                rows 0:128 = user features, rows 128:256 = movie features,
                batch mapped to the lane dimension.
    scale_ref : (256, 1) f32   eval-mode BN folded scale (user ++ movie)
    shift_ref : (256, 1) f32   eval-mode BN folded shift
    out_ref   : (1, TB) f32    2*MAX_NORM - ||v_user - v_movie||_2
    """
    h = jnp.tanh(x_ref[...] * scale_ref[...] + shift_ref[...])   # (256, TB) f32
    diff = h[:D_MAX, :] - h[D_MAX:, :]                           # (128, TB)
    d2 = jnp.sum(diff * diff, axis=0, keepdims=True)             # (1, TB), lane-dense
    out_ref[...] = 2.0 * MAX_NORM - jnp.sqrt(d2)                 # unmasked vst


# ----------------------------------------------------------------------------
# Parameter init (deterministic, shapes from the module's __init__)
# ----------------------------------------------------------------------------
def init_params(key):
    kit = iter(jax.random.split(key, 64))
    nk = lambda: next(kit)

    def make_linears():
        Ws, bs = [], []
        for j in range(N_LEVELS - 1):
            fi, fo = EMB_SIZES[j], EMB_SIZES[j + 1]
            bound = 1.0 / np.sqrt(fi)
            Ws.append(jax.random.uniform(nk(), (fi, fo), jnp.float32, -bound, bound))
            bs.append(jax.random.uniform(nk(), (fo,), jnp.float32, -bound, bound))
        return Ws, bs

    def make_bn():
        return dict(
            gamma=1.0 + 0.1 * jax.random.normal(nk(), (D_MAX,), jnp.float32),
            beta=0.1 * jax.random.normal(nk(), (D_MAX,), jnp.float32),
            mean=0.05 * jax.random.normal(nk(), (D_MAX,), jnp.float32),
            var=1.0 + 0.1 * jax.random.uniform(nk(), (D_MAX,), jnp.float32),
        )

    params = {}
    params["emb_user"] = [0.1 * jax.random.normal(nk(), (USER_NUM, d), jnp.float32)
                          for d in EMB_SIZES]
    params["emb_movie"] = [0.1 * jax.random.normal(nk(), (MOVIE_NUM, d), jnp.float32)
                           for d in EMB_SIZES]
    params["W_user"], params["b_user"] = make_linears()
    params["W_movie"], params["b_movie"] = make_linears()
    params["bn_user"] = make_bn()
    params["bn_movie"] = make_bn()
    return params


# ----------------------------------------------------------------------------
# Eval-mode algebraic pre-fold + BN fold (wrapper-side, tiny tables)
# ----------------------------------------------------------------------------
def _fold_tables(tables, Ws, bs):
    """Per level i: chain table[i] through W[i..4] (+biases) once; pad to 128."""
    folded = []
    for i in range(N_LEVELS):
        t = tables[i]
        for j in range(i, N_LEVELS - 1):
            t = jnp.dot(t, Ws[j]) + bs[j]
        folded.append(jnp.pad(t, ((0, 0), (0, D_MAX - t.shape[1]))))
    return jnp.stack(folded, axis=0)            # (6, num_rows, 128) f32


def _bn_fold(bn):
    scale = bn["gamma"] / jnp.sqrt(bn["var"] + BN_EPS)
    shift = bn["beta"] - bn["mean"] * scale
    return scale, shift


# ----------------------------------------------------------------------------
# Forward wrapper: gather selected level, lay batch on lanes, pallas_call
# ----------------------------------------------------------------------------
def rs_mlp_forward(params, u_emb_sizes, m_emb_sizes, user_id, movie_id, movie_vec=None):
    # movie_vec is unused on the den == 2 path (kept for signature fidelity).
    B = user_id.shape[0]

    # Batch tiling: lane-aligned tiles; prefer >=2 grid steps so the
    # ("parallel",) batch axis can use both v7x TensorCores.
    B_lane = _round_up(B, LANE)
    TB = min(MAX_BATCH_TILE, B_lane)
    if B_lane // TB < 2 and B_lane >= 2 * LANE:
        TB = _round_up(B_lane // 2, LANE)
    B_pad = _round_up(B_lane, TB)

    # Pre-fold the Linear chains into the tiny tables (valid in eval mode),
    # then gather only each row's own level -- this is the level selection.
    T_user = _fold_tables(params["emb_user"], params["W_user"], params["b_user"])
    T_movie = _fold_tables(params["emb_movie"], params["W_movie"], params["b_movie"])
    lvl_u = u_emb_sizes.astype(jnp.int32)
    lvl_m = m_emb_sizes.astype(jnp.int32)
    eu = T_user[lvl_u, user_id]                       # (B, 128) f32
    em = T_movie[lvl_m, movie_id]                     # (B, 128) f32

    # Batch on lanes / features on sublanes -> lane-dense kernel I/O.
    # (f32 transport keeps the kernel exact; bf16 would halve traffic again
    #  at ~1e-3 numeric drift.)
    x = jnp.concatenate([eu, em], axis=-1).T          # (256, B) f32
    if B_pad != B:
        x = jnp.pad(x, ((0, 0), (0, B_pad - B)))

    su, shu = _bn_fold(params["bn_user"])
    sm, shm = _bn_fold(params["bn_movie"])
    bn_scale = jnp.concatenate([su, sm])[:, None]     # (256, 1) f32
    bn_shift = jnp.concatenate([shu, shm])[:, None]   # (256, 1) f32

    grid = (B_pad // TB,)
    out = pl.pallas_call(
        _rs_mlp_kernel,
        out_shape=jax.ShapeDtypeStruct((1, B_pad), jnp.float32),
        grid_spec=pltpu.PrefetchScalarGridSpec(
            num_scalar_prefetch=0,
            grid=grid,
            in_specs=[
                pl.BlockSpec((D_CAT, TB), lambda i: (0, i)),   # x: batch-blocked
                pl.BlockSpec((D_CAT, 1), lambda i: (0, 0)),    # BN scale (resident)
                pl.BlockSpec((D_CAT, 1), lambda i: (0, 0)),    # BN shift (resident)
            ],
            out_specs=pl.BlockSpec((1, TB), lambda i: (0, i)),
        ),
        compiler_params=pltpu.CompilerParams(
            dimension_semantics=("parallel",)),
    )(x, bn_scale, bn_shift)
    return out[0, :B]


# ----------------------------------------------------------------------------
# Pure-JAX f32 reference: original nested-loop / one-hot-sum structure,
# faithful to the PyTorch module (eval-mode BN).
# ----------------------------------------------------------------------------
def reference_forward(params, u_emb_sizes, m_emb_sizes, user_id, movie_id):
    uw = jax.nn.one_hot(u_emb_sizes, N_LEVELS, dtype=jnp.float32)
    mw = jax.nn.one_hot(m_emb_sizes, N_LEVELS, dtype=jnp.float32)

    def bn_tanh(x, bn):
        xn = (x - bn["mean"]) / jnp.sqrt(bn["var"] + BN_EPS)
        return jnp.tanh(xn * bn["gamma"] + bn["beta"])

    def branch(tables, Ws, bs, ids, weights, bn):
        v = jnp.zeros((ids.shape[0], D_MAX), jnp.float32)
        for i in range(N_LEVELS):
            t = tables[i][ids]
            for j in range(i, N_LEVELS - 1):
                t = jnp.dot(t, Ws[j]) + bs[j]
            v = v + weights[:, i:i + 1] * bn_tanh(t, bn)
        return v

    v_user = branch(params["emb_user"], params["W_user"], params["b_user"],
                    user_id, uw, params["bn_user"])
    v_movie = branch(params["emb_movie"], params["W_movie"], params["b_movie"],
                     movie_id, mw, params["bn_movie"])
    dist = jnp.sqrt(jnp.sum((v_user - v_movie) ** 2, axis=-1))
    return 2.0 * MAX_NORM - dist


if __name__ == "__main__":
    key = jax.random.PRNGKey(0)
    pkey, k1, k2, k3, k4 = jax.random.split(key, 5)
    params = init_params(pkey)

    B = 8
    u_emb_sizes = jax.random.randint(k1, (B,), 0, N_LEVELS)
    m_emb_sizes = jax.random.randint(k2, (B,), 0, N_LEVELS)
    user_id = jax.random.randint(k3, (B,), 0, USER_NUM)
    movie_id = jax.random.randint(k4, (B,), 0, MOVIE_NUM)
    movie_vec = jnp.zeros((B, 1128), jnp.float32)   # unused on den==2 path

    out = rs_mlp_forward(params, u_emb_sizes, m_emb_sizes, user_id, movie_id, movie_vec)
    out = jax.block_until_ready(out)

    ref = reference_forward(params, u_emb_sizes, m_emb_sizes, user_id, movie_id)
    np.testing.assert_allclose(np.asarray(out), np.asarray(ref), rtol=2e-3, atol=2e-3)

    print("KERNEL_OK")
</pallas_src>

<mosaic_0001>
module attributes {stable_mosaic.version = 11 : i64} {
  func.func @_rs_mlp_kernel(%arg0: i32, %arg1: memref<256x128xf32, #tpu.memory_space<vmem>>, %arg2: memref<256x1xf32, #tpu.memory_space<vmem>>, %arg3: memref<256x1xf32, #tpu.memory_space<vmem>>, %arg4: memref<1x128xf32, #tpu.memory_space<vmem>>) attributes {dimension_semantics = [#tpu.dimension_semantics<parallel>], iteration_bounds = array<i64: 1>, scalar_prefetch = 0 : i64, scratch_operands = 0 : i64, tpu.core_type = #tpu.core_type<tc>, window_params = [{transform_indices = @transform_0, window_bounds = array<i64: 256, 128>}, {pipeline_mode = #tpu.pipeline_mode<synchronous>, transform_indices = @transform_1, window_bounds = array<i64: 256, 1>}, {pipeline_mode = #tpu.pipeline_mode<synchronous>, transform_indices = @transform_2, window_bounds = array<i64: 256, 1>}, {transform_indices = @transform_3, window_bounds = array<i64: 1, 128>}]} {
    %c0 = arith.constant 0 : index
    %c0_0 = arith.constant 0 : index
    %0 = vector.load %arg1[%c0, %c0_0] : memref<256x128xf32, #tpu.memory_space<vmem>>, vector<256x128xf32>
    %c0_1 = arith.constant 0 : index
    %c0_2 = arith.constant 0 : index
    %1 = vector.load %arg2[%c0_1, %c0_2] : memref<256x1xf32, #tpu.memory_space<vmem>>, vector<256x1xf32>
    %2 = vector.broadcast %1 : vector<256x1xf32> to vector<256x128xf32>
    %3 = arith.mulf %0, %2 : vector<256x128xf32>
    %c0_3 = arith.constant 0 : index
    %c0_4 = arith.constant 0 : index
    %4 = vector.load %arg3[%c0_3, %c0_4] : memref<256x1xf32, #tpu.memory_space<vmem>>, vector<256x1xf32>
    %5 = vector.broadcast %4 : vector<256x1xf32> to vector<256x128xf32>
    %6 = arith.addf %3, %5 : vector<256x128xf32>
    %7 = math.tanh %6 : vector<256x128xf32>
    %8 = vector.extract_strided_slice %7 {offsets = [0, 0], sizes = [128, 128], strides = [1, 1]} : vector<256x128xf32> to vector<128x128xf32>
    %9 = vector.extract_strided_slice %7 {offsets = [128, 0], sizes = [128, 128], strides = [1, 1]} : vector<256x128xf32> to vector<128x128xf32>
    %10 = arith.subf %8, %9 : vector<128x128xf32>
    %11 = arith.mulf %10, %10 : vector<128x128xf32>
    %cst = arith.constant dense<0.000000e+00> : vector<128xf32>
    %12 = vector.multi_reduction <add>, %11, %cst [0] : vector<128x128xf32> to vector<128xf32>
    %13 = vector.shape_cast %12 : vector<128xf32> to vector<1x128xf32>
    %14 = math.sqrt %13 : vector<1x128xf32>
    %cst_5 = arith.constant 2.000000e+00 : f32
    %15 = vector.broadcast %cst_5 : f32 to vector<1x128xf32>
    %16 = arith.subf %15, %14 : vector<1x128xf32>
    %c0_6 = arith.constant 0 : index
    %c0_7 = arith.constant 0 : index
    %17 = vector.load %arg4[%c0_6, %c0_7] : memref<1x128xf32, #tpu.memory_space<vmem>>, vector<1x128xf32>
    tpu.vector_store %arg4[%c0_6, %c0_7], %16 {strides = array<i32>} : memref<1x128xf32, #tpu.memory_space<vmem>>, vector<1x128xf32>,
    return
  }
  func.func @transform_0(%arg0: i32) -> (i32, i32) {
    %c0_i32 = arith.constant 0 : i32
    %c0_i32_0 = arith.constant 0 : i32
    return %c0_i32, %arg0 : i32, i32
  }
  func.func @transform_1(%arg0: i32) -> (i32, i32) {
    %c0_i32 = arith.constant 0 : i32
    %c0_i32_0 = arith.constant 0 : i32
    %c0_i32_1 = arith.constant 0 : i32
    return %c0_i32, %c0_i32_0 : i32, i32
  }
  func.func @transform_2(%arg0: i32) -> (i32, i32) {
    %c0_i32 = arith.constant 0 : i32
    %c0_i32_0 = arith.constant 0 : i32
    %c0_i32_1 = arith.constant 0 : i32
    return %c0_i32, %c0_i32_0 : i32, i32
  }
  func.func @transform_3(%arg0: i32) -> (i32, i32) {
    %c0_i32 = arith.constant 0 : i32
    %c0_i32_0 = arith.constant 0 : i32
    return %c0_i32, %arg0 : i32, i32
  }
}

</mosaic_0001>

<llo_original>
// kernel: tpu_custom_call.1
$region0: #{tpu_custom_call.1}
  #allocation0 [shape = 'u32[]', space=smem, size = 0x4, offset = 0x4, fixed_abs, tag = 'smem constant byte address 0x4 - core index']
  #allocation1 [shape = 'u32[144,128]{1,0:T(1,128)}', space=vmem, size = 0x12000, scoped, tag = 'internal scratch']
  %s0 = inlined_call_operand.vmem [shape: f32[256,128], index: 0, kind: input, shape index: {}]
  %s1 = inlined_call_operand.vmem [shape: f32[256,1], index: 1, kind: input, shape index: {}]
  %s2 = inlined_call_operand.vmem [shape: f32[256,1], index: 2, kind: input, shape index: {}]
  %s3 = inlined_call_operand.hbm [shape: f32[1,128], index: 3, kind: output, shape index: {}]
  %s4 = sld [smem:[#allocation0]]
  $region22: #{tpu_custom_call.1} parent=0
    _
  %s6 = ssub.s32 1, %s4
  %s7 = scalar_select 0, %s6, %s4
  $region1: #{tpu_custom_call.1} parent=0
    #allocation2 [shape = 'u8[512]{0}', space=vmem, size = 0x400, scoped, tag = 'output window, operand 0, single buffered']
    #allocation3 [shape = 's32[1]{0}', space=sflag, size = 0x4, scoped, tag = 'scoped memory for tpu_custom_call.1']
    %8 = vsyncpa [#allocation3], 0
    // Predicated region
    $region2: #{tpu_custom_call.1} parent=1 // pred_check
      _
    $region3: #{tpu_custom_call.1} parent=1 // pred_check_branch
      %10 = sbr.rel (0) target = $region5
    $region4: #{tpu_custom_call.1} parent=1 // pred_region
      _
    $region5: #{tpu_custom_call.1} parent=1 // pred_fallthru
      _
    // Predicated region
    $region6: #{tpu_custom_call.1} parent=1 // pred_check
      _
    $region7: #{tpu_custom_call.1} parent=1 // pred_check_branch
      %12 = sbr.rel (0) target = $region9
    $region8: #{tpu_custom_call.1} parent=1 // pred_region
      _
    $region9: #{tpu_custom_call.1} parent=1 // pred_fallthru
      _
    // Predicated region
    $region10: #{tpu_custom_call.1} parent=1 // pred_check
      _
    $region11: #{tpu_custom_call.1} parent=1 // pred_check_branch
      %14 = sbr.rel (0) target = $region13
    $region12: #{tpu_custom_call.1} parent=1 // pred_region
      _
    $region13: #{tpu_custom_call.1} parent=1 // pred_fallthru
      _
    %v15 = vld [vmem:[%s0] sm:$0xff]
    %v16 = vld [vmem:[%s0 + $0x8] sm:$0xff]
    %v17 = vld [vmem:[%s0 + $0x10] sm:$0xff]
    %v18 = vld [vmem:[%s0 + $0x18] sm:$0xff]
    %v19 = vld [vmem:[%s0 + $0x20] sm:$0xff]
    %v20 = vld [vmem:[%s0 + $0x28] sm:$0xff]
    %v21 = vld [vmem:[%s0 + $0x30] sm:$0xff]
    %v22 = vld [vmem:[%s0 + $0x38] sm:$0xff]
    %v23 = vld [vmem:[%s0 + $0x40] sm:$0xff]
    %v24 = vld [vmem:[%s0 + $0x48] sm:$0xff]
    %v25 = vld [vmem:[%s0 + $0x50] sm:$0xff]
    %v26 = vld [vmem:[%s0 + $0x58] sm:$0xff]
    %v27 = vld [vmem:[%s0 + $0x60] sm:$0xff]
    %v28 = vld [vmem:[%s0 + $0x68] sm:$0xff]
    %v29 = vld [vmem:[%s0 + $0x70] sm:$0xff]
    %v30 = vld [vmem:[%s0 + $0x78] sm:$0xff]
    %v31 = vld [vmem:[%s0 + $0x80] sm:$0xff]
    %v32 = vld [vmem:[%s0 + $0x88] sm:$0xff]
    %v33 = vld [vmem:[%s0 + $0x90] sm:$0xff]
    %v34 = vld [vmem:[%s0 + $0x98] sm:$0xff]
    %v35 = vld [vmem:[%s0 + $0xa0] sm:$0xff]
    %v36 = vld [vmem:[%s0 + $0xa8] sm:$0xff]
    %v37 = vld [vmem:[%s0 + $0xb0] sm:$0xff]
    %v38 = vld [vmem:[%s0 + $0xb8] sm:$0xff]
    %v39 = vld [vmem:[%s0 + $0xc0] sm:$0xff]
    %v40 = vld [vmem:[%s0 + $0xc8] sm:$0xff]
    %v41 = vld [vmem:[%s0 + $0xd0] sm:$0xff]
    %v42 = vld [vmem:[%s0 + $0xd8] sm:$0xff]
    %v43 = vld [vmem:[%s0 + $0xe0] sm:$0xff]
    %v44 = vld [vmem:[%s0 + $0xe8] sm:$0xff]
    %v45 = vld [vmem:[%s0 + $0xf0] sm:$0xff]
    %v46 = vld [vmem:[%s0 + $0xf8] sm:$0xff]
    %v47 = vld [vmem:[%s1] sm:$0xff]
    %v48 = vld [vmem:[%s1 + $0x8] sm:$0xff]
    %v49 = vld [vmem:[%s1 + $0x10] sm:$0xff]
    %v50 = vld [vmem:[%s1 + $0x18] sm:$0xff]
    %v51 = vld [vmem:[%s1 + $0x20] sm:$0xff]
    %v52 = vld [vmem:[%s1 + $0x28] sm:$0xff]
    %v53 = vld [vmem:[%s1 + $0x30] sm:$0xff]
    %v54 = vld [vmem:[%s1 + $0x38] sm:$0xff]
    %v55 = vld [vmem:[%s1 + $0x40] sm:$0xff]
    %v56 = vld [vmem:[%s1 + $0x48] sm:$0xff]
    %v57 = vld [vmem:[%s1 + $0x50] sm:$0xff]
    %v58 = vld [vmem:[%s1 + $0x58] sm:$0xff]
    %v59 = vld [vmem:[%s1 + $0x60] sm:$0xff]
    %v60 = vld [vmem:[%s1 + $0x68] sm:$0xff]
    %v61 = vld [vmem:[%s1 + $0x70] sm:$0xff]
    %v62 = vld [vmem:[%s1 + $0x78] sm:$0xff]
    %v63 = vld [vmem:[%s1 + $0x80] sm:$0xff]
    %v64 = vld [vmem:[%s1 + $0x88] sm:$0xff]
    %v65 = vld [vmem:[%s1 + $0x90] sm:$0xff]
    %v66 = vld [vmem:[%s1 + $0x98] sm:$0xff]
    %v67 = vld [vmem:[%s1 + $0xa0] sm:$0xff]
    %v68 = vld [vmem:[%s1 + $0xa8] sm:$0xff]
    %v69 = vld [vmem:[%s1 + $0xb0] sm:$0xff]
    %v70 = vld [vmem:[%s1 + $0xb8] sm:$0xff]
    %v71 = vld [vmem:[%s1 + $0xc0] sm:$0xff]
    %v72 = vld [vmem:[%s1 + $0xc8] sm:$0xff]
    %v73 = vld [vmem:[%s1 + $0xd0] sm:$0xff]
    %v74 = vld [vmem:[%s1 + $0xd8] sm:$0xff]
    %v75 = vld [vmem:[%s1 + $0xe0] sm:$0xff]
    %v76 = vld [vmem:[%s1 + $0xe8] sm:$0xff]
    %v77 = vld [vmem:[%s1 + $0xf0] sm:$0xff]
    %v78 = vld [vmem:[%s1 + $0xf8] sm:$0xff]
    %80 = vset.pattern.permute.xlu0 0
    %81 = vperm.xlu0 %80, %v47
    %v82 = vpop.permute.xlu0 %81
    %85 = vset.pattern.permute.xlu0 0
    %86 = vperm.xlu0 %85, %v48
    %v87 = vpop.permute.xlu0 %86
    %90 = vset.pattern.permute.xlu0 0
    %91 = vperm.xlu0 %90, %v49
    %v92 = vpop.permute.xlu0 %91
    %95 = vset.pattern.permute.xlu0 0
    %96 = vperm.xlu0 %95, %v50
    %v97 = vpop.permute.xlu0 %96
    %100 = vset.pattern.permute.xlu0 0
    %101 = vperm.xlu0 %100, %v51
    %v102 = vpop.permute.xlu0 %101
    %105 = vset.pattern.permute.xlu0 0
    %106 = vperm.xlu0 %105, %v52
    %v107 = vpop.permute.xlu0 %106
    %110 = vset.pattern.permute.xlu0 0
    %111 = vperm.xlu0 %110, %v53
    %v112 = vpop.permute.xlu0 %111
    %115 = vset.pattern.permute.xlu0 0
    %116 = vperm.xlu0 %115, %v54
    %v117 = vpop.permute.xlu0 %116
    %120 = vset.pattern.permute.xlu0 0
    %121 = vperm.xlu0 %120, %v55
    %v122 = vpop.permute.xlu0 %121
    %125 = vset.pattern.permute.xlu0 0
    %126 = vperm.xlu0 %125, %v56
    %v127 = vpop.permute.xlu0 %126
    %130 = vset.pattern.permute.xlu0 0
    %131 = vperm.xlu0 %130, %v57
    %v132 = vpop.permute.xlu0 %131
    %135 = vset.pattern.permute.xlu0 0
    %136 = vperm.xlu0 %135, %v58
    %v137 = vpop.permute.xlu0 %136
    %140 = vset.pattern.permute.xlu0 0
    %141 = vperm.xlu0 %140, %v59
    %v142 = vpop.permute.xlu0 %141
    %145 = vset.pattern.permute.xlu0 0
    %146 = vperm.xlu0 %145, %v60
    %v147 = vpop.permute.xlu0 %146
    %150 = vset.pattern.permute.xlu0 0
    %151 = vperm.xlu0 %150, %v61
    %v152 = vpop.permute.xlu0 %151
    %155 = vset.pattern.permute.xlu0 0
    %156 = vperm.xlu0 %155, %v62
    %v157 = vpop.permute.xlu0 %156
    %160 = vset.pattern.permute.xlu0 0
    %161 = vperm.xlu0 %160, %v63
    %v162 = vpop.permute.xlu0 %161
    %165 = vset.pattern.permute.xlu0 0
    %166 = vperm.xlu0 %165, %v64
    %v167 = vpop.permute.xlu0 %166
    %170 = vset.pattern.permute.xlu0 0
    %171 = vperm.xlu0 %170, %v65
    %v172 = vpop.permute.xlu0 %171
    %175 = vset.pattern.permute.xlu0 0
    %176 = vperm.xlu0 %175, %v66
    %v177 = vpop.permute.xlu0 %176
    %180 = vset.pattern.permute.xlu0 0
    %181 = vperm.xlu0 %180, %v67
    %v182 = vpop.permute.xlu0 %181
    %185 = vset.pattern.permute.xlu0 0
    %186 = vperm.xlu0 %185, %v68
    %v187 = vpop.permute.xlu0 %186
    %190 = vset.pattern.permute.xlu0 0
    %191 = vperm.xlu0 %190, %v69
    %v192 = vpop.permute.xlu0 %191
    %195 = vset.pattern.permute.xlu0 0
    %196 = vperm.xlu0 %195, %v70
    %v197 = vpop.permute.xlu0 %196
    %200 = vset.pattern.permute.xlu0 0
    %201 = vperm.xlu0 %200, %v71
    %v202 = vpop.permute.xlu0 %201
    %205 = vset.pattern.permute.xlu0 0
    %206 = vperm.xlu0 %205, %v72
    %v207 = vpop.permute.xlu0 %206
    %210 = vset.pattern.permute.xlu0 0
    %211 = vperm.xlu0 %210, %v73
    %v212 = vpop.permute.xlu0 %211
    %215 = vset.pattern.permute.xlu0 0
    %216 = vperm.xlu0 %215, %v74
    %v217 = vpop.permute.xlu0 %216
    %220 = vset.pattern.permute.xlu0 0
    %221 = vperm.xlu0 %220, %v75
    %v222 = vpop.permute.xlu0 %221
    %225 = vset.pattern.permute.xlu0 0
    %226 = vperm.xlu0 %225, %v76
    %v227 = vpop.permute.xlu0 %226
    %230 = vset.pattern.permute.xlu0 0
    %231 = vperm.xlu0 %230, %v77
    %v232 = vpop.permute.xlu0 %231
    %235 = vset.pattern.permute.xlu0 0
    %236 = vperm.xlu0 %235, %v78
    %v237 = vpop.permute.xlu0 %236
    %v239 = vmul.f32 %v15, %v82
    %v240 = vmul.f32 %v16, %v87
    %v241 = vmul.f32 %v17, %v92
    %v242 = vmul.f32 %v18, %v97
    %v243 = vmul.f32 %v19, %v102
    %v244 = vmul.f32 %v20, %v107
    %v245 = vmul.f32 %v21, %v112
    %v246 = vmul.f32 %v22, %v117
    %v247 = vmul.f32 %v23, %v122
    %v248 = vmul.f32 %v24, %v127
    %v249 = vmul.f32 %v25, %v132
    %v250 = vmul.f32 %v26, %v137
    %v251 = vmul.f32 %v27, %v142
    %v252 = vmul.f32 %v28, %v147
    %v253 = vmul.f32 %v29, %v152
    %v254 = vmul.f32 %v30, %v157
    %v255 = vmul.f32 %v31, %v162
    %v256 = vmul.f32 %v32, %v167
    %v257 = vmul.f32 %v33, %v172
    %v258 = vmul.f32 %v34, %v177
    %v259 = vmul.f32 %v35, %v182
    %v260 = vmul.f32 %v36, %v187
    %v261 = vmul.f32 %v37, %v192
    %v262 = vmul.f32 %v38, %v197
    %v263 = vmul.f32 %v39, %v202
    %v264 = vmul.f32 %v40, %v207
    %v265 = vmul.f32 %v41, %v212
    %v266 = vmul.f32 %v42, %v217
    %v267 = vmul.f32 %v43, %v222
    %v268 = vmul.f32 %v44, %v227
    %v269 = vmul.f32 %v45, %v232
    %v270 = vmul.f32 %v46, %v237
    %v271 = vld [vmem:[%s2] sm:$0xff]
    %v272 = vld [vmem:[%s2 + $0x8] sm:$0xff]
    %v273 = vld [vmem:[%s2 + $0x10] sm:$0xff]
    %v274 = vld [vmem:[%s2 + $0x18] sm:$0xff]
    %v275 = vld [vmem:[%s2 + $0x20] sm:$0xff]
    %v276 = vld [vmem:[%s2 + $0x28] sm:$0xff]
    %v277 = vld [vmem:[%s2 + $0x30] sm:$0xff]
    %v278 = vld [vmem:[%s2 + $0x38] sm:$0xff]
    %v279 = vld [vmem:[%s2 + $0x40] sm:$0xff]
    %v280 = vld [vmem:[%s2 + $0x48] sm:$0xff]
    %v281 = vld [vmem:[%s2 + $0x50] sm:$0xff]
    %v282 = vld [vmem:[%s2 + $0x58] sm:$0xff]
    %v283 = vld [vmem:[%s2 + $0x60] sm:$0xff]
    %v284 = vld [vmem:[%s2 + $0x68] sm:$0xff]
    %v285 = vld [vmem:[%s2 + $0x70] sm:$0xff]
    %v286 = vld [vmem:[%s2 + $0x78] sm:$0xff]
    %v287 = vld [vmem:[%s2 + $0x80] sm:$0xff]
    %v288 = vld [vmem:[%s2 + $0x88] sm:$0xff]
    %v289 = vld [vmem:[%s2 + $0x90] sm:$0xff]
    %v290 = vld [vmem:[%s2 + $0x98] sm:$0xff]
    %v291 = vld [vmem:[%s2 + $0xa0] sm:$0xff]
    %v292 = vld [vmem:[%s2 + $0xa8] sm:$0xff]
    %v293 = vld [vmem:[%s2 + $0xb0] sm:$0xff]
    %v294 = vld [vmem:[%s2 + $0xb8] sm:$0xff]
    %v295 = vld [vmem:[%s2 + $0xc0] sm:$0xff]
    %v296 = vld [vmem:[%s2 + $0xc8] sm:$0xff]
    %v297 = vld [vmem:[%s2 + $0xd0] sm:$0xff]
    %v298 = vld [vmem:[%s2 + $0xd8] sm:$0xff]
    %v299 = vld [vmem:[%s2 + $0xe0] sm:$0xff]
    %v300 = vld [vmem:[%s2 + $0xe8] sm:$0xff]
    %v301 = vld [vmem:[%s2 + $0xf0] sm:$0xff]
    %v302 = vld [vmem:[%s2 + $0xf8] sm:$0xff]
    %304 = vset.pattern.permute.xlu0 0
    %305 = vperm.xlu0 %304, %v271
    %v306 = vpop.permute.xlu0 %305
    %309 = vset.pattern.permute.xlu0 0
    %310 = vperm.xlu0 %309, %v272
    %v311 = vpop.permute.xlu0 %310
    %314 = vset.pattern.permute.xlu0 0
    %315 = vperm.xlu0 %314, %v273
    %v316 = vpop.permute.xlu0 %315
    %319 = vset.pattern.permute.xlu0 0
    %320 = vperm.xlu0 %319, %v274
    %v321 = vpop.permute.xlu0 %320
    %324 = vset.pattern.permute.xlu0 0
    %325 = vperm.xlu0 %324, %v275
    %v326 = vpop.permute.xlu0 %325
    %329 = vset.pattern.permute.xlu0 0
    %330 = vperm.xlu0 %329, %v276
    %v331 = vpop.permute.xlu0 %330
    %334 = vset.pattern.permute.xlu0 0
    %335 = vperm.xlu0 %334, %v277
    %v336 = vpop.permute.xlu0 %335
    %339 = vset.pattern.permute.xlu0 0
    %340 = vperm.xlu0 %339, %v278
    %v341 = vpop.permute.xlu0 %340
    %344 = vset.pattern.permute.xlu0 0
    %345 = vperm.xlu0 %344, %v279
    %v346 = vpop.permute.xlu0 %345
    %349 = vset.pattern.permute.xlu0 0
    %350 = vperm.xlu0 %349, %v280
    %v351 = vpop.permute.xlu0 %350
    %354 = vset.pattern.permute.xlu0 0
    %355 = vperm.xlu0 %354, %v281
    %v356 = vpop.permute.xlu0 %355
    %359 = vset.pattern.permute.xlu0 0
    %360 = vperm.xlu0 %359, %v282
    %v361 = vpop.permute.xlu0 %360
    %364 = vset.pattern.permute.xlu0 0
    %365 = vperm.xlu0 %364, %v283
    %v366 = vpop.permute.xlu0 %365
    %369 = vset.pattern.permute.xlu0 0
    %370 = vperm.xlu0 %369, %v284
    %v371 = vpop.permute.xlu0 %370
    %374 = vset.pattern.permute.xlu0 0
    %375 = vperm.xlu0 %374, %v285
    %v376 = vpop.permute.xlu0 %375
    %379 = vset.pattern.permute.xlu0 0
    %380 = vperm.xlu0 %379, %v286
    %v381 = vpop.permute.xlu0 %380
    %384 = vset.pattern.permute.xlu0 0
    %385 = vperm.xlu0 %384, %v287
    %v386 = vpop.permute.xlu0 %385
    %389 = vset.pattern.permute.xlu0 0
    %390 = vperm.xlu0 %389, %v288
    %v391 = vpop.permute.xlu0 %390
    %394 = vset.pattern.permute.xlu0 0
    %395 = vperm.xlu0 %394, %v289
    %v396 = vpop.permute.xlu0 %395
    %399 = vset.pattern.permute.xlu0 0
    %400 = vperm.xlu0 %399, %v290
    %v401 = vpop.permute.xlu0 %400
    %404 = vset.pattern.permute.xlu0 0
    %405 = vperm.xlu0 %404, %v291
    %v406 = vpop.permute.xlu0 %405
    %409 = vset.pattern.permute.xlu0 0
    %410 = vperm.xlu0 %409, %v292
    %v411 = vpop.permute.xlu0 %410
    %414 = vset.pattern.permute.xlu0 0
    %415 = vperm.xlu0 %414, %v293
    %v416 = vpop.permute.xlu0 %415
    %419 = vset.pattern.permute.xlu0 0
    %420 = vperm.xlu0 %419, %v294
    %v421 = vpop.permute.xlu0 %420
    %424 = vset.pattern.permute.xlu0 0
    %425 = vperm.xlu0 %424, %v295
    %v426 = vpop.permute.xlu0 %425
    %429 = vset.pattern.permute.xlu0 0
    %430 = vperm.xlu0 %429, %v296
    %v431 = vpop.permute.xlu0 %430
    %434 = vset.pattern.permute.xlu0 0
    %435 = vperm.xlu0 %434, %v297
    %v436 = vpop.permute.xlu0 %435
    %439 = vset.pattern.permute.xlu0 0
    %440 = vperm.xlu0 %439, %v298
    %v441 = vpop.permute.xlu0 %440
    %444 = vset.pattern.permute.xlu0 0
    %445 = vperm.xlu0 %444, %v299
    %v446 = vpop.permute.xlu0 %445
    %449 = vset.pattern.permute.xlu0 0
    %450 = vperm.xlu0 %449, %v300
    %v451 = vpop.permute.xlu0 %450
    %454 = vset.pattern.permute.xlu0 0
    %455 = vperm.xlu0 %454, %v301
    %v456 = vpop.permute.xlu0 %455
    %459 = vset.pattern.permute.xlu0 0
    %460 = vperm.xlu0 %459, %v302
    %v461 = vpop.permute.xlu0 %460
    %v463 = vadd.f32 %v239, %v306
    %v464 = vadd.f32 %v240, %v311
    %v465 = vadd.f32 %v241, %v316
    %v466 = vadd.f32 %v242, %v321
    %v467 = vadd.f32 %v243, %v326
    %v468 = vadd.f32 %v244, %v331
    %v469 = vadd.f32 %v245, %v336
    %v470 = vadd.f32 %v246, %v341
    %v471 = vadd.f32 %v247, %v346
    %v472 = vadd.f32 %v248, %v351
    %v473 = vadd.f32 %v249, %v356
    %v474 = vadd.f32 %v250, %v361
    %v475 = vadd.f32 %v251, %v366
    %v476 = vadd.f32 %v252, %v371
    %v477 = vadd.f32 %v253, %v376
    %v478 = vadd.f32 %v254, %v381
    %v479 = vadd.f32 %v255, %v386
    %v480 = vadd.f32 %v256, %v391
    %v481 = vadd.f32 %v257, %v396
    %v482 = vadd.f32 %v258, %v401
    %v483 = vadd.f32 %v259, %v406
    %v484 = vadd.f32 %v260, %v411
    %v485 = vadd.f32 %v261, %v416
    %v486 = vadd.f32 %v262, %v421
    %v487 = vadd.f32 %v263, %v426
    %v488 = vadd.f32 %v264, %v431
    %v489 = vadd.f32 %v265, %v436
    %v490 = vadd.f32 %v266, %v441
    %v491 = vadd.f32 %v267, %v446
    %v492 = vadd.f32 %v268, %v451
    %v493 = vadd.f32 %v269, %v456
    %v494 = vadd.f32 %v270, %v461
    %v495 = vtanh.pop %v463
    %v496 = vtanh.pop %v464
    %v497 = vtanh.pop %v465
    %v498 = vtanh.pop %v466
    %v499 = vtanh.pop %v467
    %v500 = vtanh.pop %v468
    %v501 = vtanh.pop %v469
    %v502 = vtanh.pop %v470
    %v503 = vtanh.pop %v471
    %v504 = vtanh.pop %v472
    %v505 = vtanh.pop %v473
    %v506 = vtanh.pop %v474
    %v507 = vtanh.pop %v475
    %v508 = vtanh.pop %v476
    %v509 = vtanh.pop %v477
    %v510 = vtanh.pop %v478
    %v511 = vtanh.pop %v479
    %v512 = vtanh.pop %v480
    %v513 = vtanh.pop %v481
    %v514 = vtanh.pop %v482
    %v515 = vtanh.pop %v483
    %v516 = vtanh.pop %v484
    %v517 = vtanh.pop %v485
    %v518 = vtanh.pop %v486
    %v519 = vtanh.pop %v487
    %v520 = vtanh.pop %v488
    %v521 = vtanh.pop %v489
    %v522 = vtanh.pop %v490
    %v523 = vtanh.pop %v491
    %v524 = vtanh.pop %v492
    %v525 = vtanh.pop %v493
    %v526 = vtanh.pop %v494
    %v527 = vsub.f32 %v495, %v511
    %v528 = vsub.f32 %v496, %v512
    %v529 = vsub.f32 %v497, %v513
    %v530 = vsub.f32 %v498, %v514
    %v531 = vsub.f32 %v499, %v515
    %v532 = vsub.f32 %v500, %v516
    %v533 = vsub.f32 %v501, %v517
    %v534 = vsub.f32 %v502, %v518
    %v535 = vsub.f32 %v503, %v519
    %v536 = vsub.f32 %v504, %v520
    %v537 = vsub.f32 %v505, %v521
    %v538 = vsub.f32 %v506, %v522
    %v539 = vsub.f32 %v507, %v523
    %v540 = vsub.f32 %v508, %v524
    %v541 = vsub.f32 %v509, %v525
    %v542 = vsub.f32 %v510, %v526
    %v543 = vmul.f32 %v527, %v527
    %v544 = vmul.f32 %v528, %v528
    %v545 = vmul.f32 %v529, %v529
    %v546 = vmul.f32 %v530, %v530
    %v547 = vmul.f32 %v531, %v531
    %v548 = vmul.f32 %v532, %v532
    %v549 = vmul.f32 %v533, %v533
    %v550 = vmul.f32 %v534, %v534
    %v551 = vmul.f32 %v535, %v535
    %v552 = vmul.f32 %v536, %v536
    %v553 = vmul.f32 %v537, %v537
    %v554 = vmul.f32 %v538, %v538
    %v555 = vmul.f32 %v539, %v539
    %v556 = vmul.f32 %v540, %v540
    %v557 = vmul.f32 %v541, %v541
    %v558 = vmul.f32 %v542, %v542
    %v559 = vadd.f32 %v543, %v544
    %v560 = vadd.f32 %v559, %v545
    %v561 = vadd.f32 %v560, %v546
    %v562 = vadd.f32 %v561, %v547
    %v563 = vadd.f32 %v562, %v548
    %v564 = vadd.f32 %v563, %v549
    %v565 = vadd.f32 %v564, %v550
    %v566 = vadd.f32 %v565, %v551
    %v567 = vadd.f32 %v566, %v552
    %v568 = vadd.f32 %v567, %v553
    %v569 = vadd.f32 %v568, %v554
    %v570 = vadd.f32 %v569, %v555
    %v571 = vadd.f32 %v570, %v556
    %v572 = vadd.f32 %v571, %v557
    %v573 = vadd.f32 %v572, %v558
    %v574 = vrot.slane %v573, 4
    %v575 = vadd.f32 %v573, %v574
    %v576 = vrot.slane %v575, 2
    %v577 = vadd.f32 %v575, %v576
    %v578 = vrot.slane %v577, 1
    %v579 = vadd.f32 %v577, %v578
    %v580 = vrsqrt.pop %v579
    %v581 = vmul.f32 %v579, %v580
    %vm582 = vcmp.eq.f32.partialorder %v579, inf
    %v583 = vsel %vm582, %v579, %v581
    %vm584 = vcmp.eq.f32.partialorder %v579, 0.0
    %v585 = vand.u32 %v579, 2147483648
    %v586 = vsel %vm584, %v585, %v583
    %v587 = vsub.f32 2.0, %v586
    %588 = vst [vmem:[#allocation2] sm:$0x1] %v587
    // Predicated region
    $region14: #{tpu_custom_call.1} parent=1 // pred_check
      _
    $region15: #{tpu_custom_call.1} parent=1 // pred_check_branch
      %590 = sbr.rel (0) target = $region17
    $region16: #{tpu_custom_call.1} parent=1 // pred_region
      %s592 = ssub.s32 16, 16
      %593 = vsyncadd [#allocation3], %s592
      %s595 = sshll.u32 [#allocation2], 4
      %s596 = int_to_ptr.vmem [resolvable:$true] %s595
      %598 = dma.vmem_to_hbm [thread:$0]  %s596, 16, %s3, [#allocation3]
    $region17: #{tpu_custom_call.1} parent=1 // pred_fallthru
      _
    // Predicated region
    $region18: #{tpu_custom_call.1} parent=1 // pred_check
      _
    $region19: #{tpu_custom_call.1} parent=1 // pred_check_branch
      %600 = sbr.rel (0) target = $region21
    $region20: #{tpu_custom_call.1} parent=1 // pred_region
      %601 = dma.done [#allocation3], 16
    $region21: #{tpu_custom_call.1} parent=1 // pred_fallthru
      _
    %602 = vsyncpa [#allocation3], 1

</llo_original>
